<compile_context>
chip_gen: v7x
topology: tpu7x:2x2x1
jax: 0.10.0
libtpu: 0.0.40
codegen_flags: <defaults>
</compile_context>

<pallas_src>
import jax
import jax.numpy as jnp
from jax.experimental import pallas as pl
from jax.experimental.pallas import tpu as pltpu

_LANES = 128
_SUBLANES = 8
_TARGET_ROWS = 2048          # (2048, 128) f32 block == 1 MiB per operand per step


def _masked_l1_kernel(x_ref, y_ref, m_ref, num_ref, den_ref):
    """One grid step = one (TR, 128) row-block of the flattened tensors."""
    j = pl.program_id(1)

    @pl.when(j == 0)
    def _init():
        num_ref[...] = jnp.zeros_like(num_ref)
        den_ref[...] = jnp.zeros_like(den_ref)

    x = x_ref[...].astype(jnp.float32)
    y = y_ref[...].astype(jnp.float32)
    w = 1.0 - m_ref[...].astype(jnp.float32)       # "masked" weights
    d = jnp.abs(x * w - y * w)                     # (TR, 128)

    tr = d.shape[0]
    # Per-lane partial sums: (TR//8 - 1) vreg adds on the VPU, no cross-lane work.
    num_ref[...] += d.reshape(tr // _SUBLANES, _SUBLANES, _LANES).sum(axis=0)[None]
    den_ref[...] += w.reshape(tr // _SUBLANES, _SUBLANES, _LANES).sum(axis=0)[None]


def _largest_divisor_leq(n, cap):
    cap = min(cap, n)
    for d in range(cap, 0, -1):
        if n % d == 0:
            return d
    return 1


def masked_l1_mean(outputs, targets, masks):
    """loss = sum(|outputs*(1-masks) - targets*(1-masks)|) / sum(1-masks)."""
    assert outputs.shape == targets.shape
    out_size = outputs.size

    den_scale = 1.0
    masks_b = masks
    if masks.shape != outputs.shape:
        # Broadcast (e.g. (B,T,1,H,W) -> (B,T,C,H,W)) for the numerator; the
        # kernel then counts every original mask element out_size/masks.size
        # times, so rescale the denominator exactly.
        masks_b = jnp.broadcast_to(masks, outputs.shape)
        den_scale = float(masks.size) / float(out_size)

    x = outputs.reshape(-1)
    y = targets.reshape(-1)
    m = masks_b.reshape(-1)

    # Choose a padded total length and row-block size TR (multiple of 8,
    # divisor of the row count, ~_TARGET_ROWS rows).
    chunk = _SUBLANES * _LANES                       # 1024
    n = x.shape[0]
    n_pad = -(-n // chunk) * chunk                   # round up to 8*128
    rows = n_pad // _LANES                           # multiple of 8
    if rows <= _TARGET_ROWS:
        tr = rows
    else:
        best = _largest_divisor_leq(rows // _SUBLANES, _TARGET_ROWS // _SUBLANES)
        tr = best * _SUBLANES
        if tr < 512:                                 # awkward factorization -> pad rows up
            rows = -(-rows // _TARGET_ROWS) * _TARGET_ROWS
            n_pad = rows * _LANES
            tr = _TARGET_ROWS

    pad = n_pad - n
    if pad:
        x = jnp.pad(x, (0, pad))
        y = jnp.pad(y, (0, pad))
        m = jnp.pad(m, (0, pad), constant_values=1)  # (1 - 1) == 0 -> no contribution

    x = x.reshape(rows, _LANES)
    y = y.reshape(rows, _LANES)
    m = m.reshape(rows, _LANES)

    nblocks = rows // tr
    g0 = 2 if (nblocks % 2 == 0 and nblocks >= 2) else 1   # megacore split (v7x)
    g1 = nblocks // g0

    in_map = lambda i, j: (i * g1 + j, 0)
    out_map = lambda i, j: (i, 0, 0)

    num_parts, den_parts = pl.pallas_call(
        _masked_l1_kernel,
        out_shape=(
            jax.ShapeDtypeStruct((g0, _SUBLANES, _LANES), jnp.float32),
            jax.ShapeDtypeStruct((g0, _SUBLANES, _LANES), jnp.float32),
        ),
        grid_spec=pltpu.PrefetchScalarGridSpec(
            num_scalar_prefetch=0,
            grid=(g0, g1),
            in_specs=[
                pl.BlockSpec((tr, _LANES), in_map),
                pl.BlockSpec((tr, _LANES), in_map),
                pl.BlockSpec((tr, _LANES), in_map),
            ],
            out_specs=[
                pl.BlockSpec((1, _SUBLANES, _LANES), out_map),   # resident accumulators
                pl.BlockSpec((1, _SUBLANES, _LANES), out_map),
            ],
        ),
        compiler_params=pltpu.CompilerParams(
            dimension_semantics=("parallel", "arbitrary")),
    )(x, y, m)

    l1_sum = jnp.sum(num_parts)                       # single tiny cross-lane reduce
    mask_sum = jnp.sum(den_parts) * jnp.float32(den_scale)
    return l1_sum / mask_sum


def complete_frames_recon_loss(data_input, model_output):
    """Mirror of CompleteFramesReconLoss.forward(data_input, model_output)."""
    return masked_l1_mean(model_output["outputs"],
                          data_input["targets"],
                          data_input["masks"])


def _reference(outputs, targets, masks):
    """Pure-JAX reference of the PyTorch module for a sanity check."""
    masked = 1.0 - masks
    l1_sum = jnp.sum(jnp.abs(outputs * masked - targets * masked))
    return l1_sum / jnp.sum(masked)


if __name__ == "__main__":
    key = jax.random.PRNGKey(0)
    k1, k2, k3 = jax.random.split(key, 3)
    B, T, C, H, W = 2, 3, 4, 16, 16

    targets = jax.random.uniform(k1, (B, T, C, H, W), dtype=jnp.float32)
    outputs = jax.random.uniform(k2, (B, T, C, H, W), dtype=jnp.float32)
    masks = jax.random.bernoulli(k3, 0.4, (B, T, C, H, W)).astype(jnp.float32)

    data_input = {"targets": targets, "masks": masks}
    model_output = {"outputs": outputs}

    loss = complete_frames_recon_loss(data_input, model_output)
    jax.block_until_ready(loss)
    ref = _reference(outputs, targets, masks)
    assert jnp.allclose(loss, ref, atol=1e-5, rtol=1e-4), (loss, ref)

    # Also exercise the broadcast path (per-pixel single-channel masks, the
    # common shape for video-inpainting masks).
    masks_c1 = jax.random.bernoulli(k3, 0.4, (B, T, 1, H, W)).astype(jnp.float32)
    loss_c1 = masked_l1_mean(outputs, targets, masks_c1)
    jax.block_until_ready(loss_c1)
    ref_c1 = _reference(outputs, targets, masks_c1)
    assert jnp.allclose(loss_c1, ref_c1, atol=1e-5, rtol=1e-4), (loss_c1, ref_c1)

    print("KERNEL_OK")
</pallas_src>

<mosaic_0001>
module attributes {stable_mosaic.version = 11 : i64} {
  func.func @_masked_l1_kernel(%arg0: i32, %arg1: i32, %arg2: memref<48x128xf32, #tpu.memory_space<vmem>>, %arg3: memref<48x128xf32, #tpu.memory_space<vmem>>, %arg4: memref<48x128xf32, #tpu.memory_space<vmem>>, %arg5: memref<1x8x128xf32, #tpu.memory_space<vmem>>, %arg6: memref<1x8x128xf32, #tpu.memory_space<vmem>>) attributes {dimension_semantics = [#tpu.dimension_semantics<parallel>, #tpu.dimension_semantics<arbitrary>], iteration_bounds = array<i64: 1, 1>, scalar_prefetch = 0 : i64, scratch_operands = 0 : i64, tpu.core_type = #tpu.core_type<tc>, window_params = [{transform_indices = @transform_0, window_bounds = array<i64: 48, 128>}, {transform_indices = @transform_1, window_bounds = array<i64: 48, 128>}, {transform_indices = @transform_2, window_bounds = array<i64: 48, 128>}, {transform_indices = @transform_3, window_bounds = array<i64: 1, 8, 128>}, {transform_indices = @transform_4, window_bounds = array<i64: 1, 8, 128>}]} {
    %c0_i32 = arith.constant 0 : i32
    %0 = arith.cmpi eq, %arg1, %c0_i32 : i32
    %1 = arith.extui %0 : i1 to i32
    %c0_i32_0 = arith.constant 0 : i32
    %2 = arith.cmpi ne, %1, %c0_i32_0 : i32
    scf.if %2 {
      %cst_20 = arith.constant 0.000000e+00 : f32
      %24 = vector.broadcast %cst_20 : f32 to vector<1x8x128xf32>
      %c0_21 = arith.constant 0 : index
      %c0_22 = arith.constant 0 : index
      %c0_23 = arith.constant 0 : index
      %25 = vector.load %arg5[%c0_21, %c0_22, %c0_23] : memref<1x8x128xf32, #tpu.memory_space<vmem>>, vector<1x8x128xf32>
      tpu.vector_store %arg5[%c0_21, %c0_22, %c0_23], %24 {strides = array<i32>} : memref<1x8x128xf32, #tpu.memory_space<vmem>>, vector<1x8x128xf32>,
      %cst_24 = arith.constant 0.000000e+00 : f32
      %26 = vector.broadcast %cst_24 : f32 to vector<1x8x128xf32>
      %c0_25 = arith.constant 0 : index
      %c0_26 = arith.constant 0 : index
      %c0_27 = arith.constant 0 : index
      %27 = vector.load %arg6[%c0_25, %c0_26, %c0_27] : memref<1x8x128xf32, #tpu.memory_space<vmem>>, vector<1x8x128xf32>
      tpu.vector_store %arg6[%c0_25, %c0_26, %c0_27], %26 {strides = array<i32>} : memref<1x8x128xf32, #tpu.memory_space<vmem>>, vector<1x8x128xf32>,
    } else {
    }
    %c0 = arith.constant 0 : index
    %c0_1 = arith.constant 0 : index
    %3 = vector.load %arg2[%c0, %c0_1] : memref<48x128xf32, #tpu.memory_space<vmem>>, vector<48x128xf32>
    %c0_2 = arith.constant 0 : index
    %c0_3 = arith.constant 0 : index
    %4 = vector.load %arg3[%c0_2, %c0_3] : memref<48x128xf32, #tpu.memory_space<vmem>>, vector<48x128xf32>
    %c0_4 = arith.constant 0 : index
    %c0_5 = arith.constant 0 : index
    %5 = vector.load %arg4[%c0_4, %c0_5] : memref<48x128xf32, #tpu.memory_space<vmem>>, vector<48x128xf32>
    %cst = arith.constant 1.000000e+00 : f32
    %6 = vector.broadcast %cst : f32 to vector<48x128xf32>
    %7 = arith.subf %6, %5 : vector<48x128xf32>
    %8 = arith.mulf %3, %7 : vector<48x128xf32>
    %9 = arith.mulf %4, %7 : vector<48x128xf32>
    %10 = arith.subf %8, %9 : vector<48x128xf32>
    %11 = math.absf %10 : vector<48x128xf32>
    %c0_6 = arith.constant 0 : index
    %c0_7 = arith.constant 0 : index
    %c0_8 = arith.constant 0 : index
    %12 = vector.load %arg5[%c0_6, %c0_7, %c0_8] : memref<1x8x128xf32, #tpu.memory_space<vmem>>, vector<1x8x128xf32>
    %13 = vector.shape_cast %11 : vector<48x128xf32> to vector<6x8x128xf32>
    %cst_9 = arith.constant dense<0.000000e+00> : vector<8x128xf32>
    %14 = vector.multi_reduction <add>, %13, %cst_9 [0] : vector<6x8x128xf32> to vector<8x128xf32>
    %15 = vector.shape_cast %14 : vector<8x128xf32> to vector<1x8x128xf32>
    %16 = arith.addf %12, %15 : vector<1x8x128xf32>
    %c0_10 = arith.constant 0 : index
    %c0_11 = arith.constant 0 : index
    %c0_12 = arith.constant 0 : index
    %17 = vector.load %arg5[%c0_10, %c0_11, %c0_12] : memref<1x8x128xf32, #tpu.memory_space<vmem>>, vector<1x8x128xf32>
    tpu.vector_store %arg5[%c0_10, %c0_11, %c0_12], %16 {strides = array<i32>} : memref<1x8x128xf32, #tpu.memory_space<vmem>>, vector<1x8x128xf32>,
    %c0_13 = arith.constant 0 : index
    %c0_14 = arith.constant 0 : index
    %c0_15 = arith.constant 0 : index
    %18 = vector.load %arg6[%c0_13, %c0_14, %c0_15] : memref<1x8x128xf32, #tpu.memory_space<vmem>>, vector<1x8x128xf32>
    %19 = vector.shape_cast %7 : vector<48x128xf32> to vector<6x8x128xf32>
    %cst_16 = arith.constant dense<0.000000e+00> : vector<8x128xf32>
    %20 = vector.multi_reduction <add>, %19, %cst_16 [0] : vector<6x8x128xf32> to vector<8x128xf32>
    %21 = vector.shape_cast %20 : vector<8x128xf32> to vector<1x8x128xf32>
    %22 = arith.addf %18, %21 : vector<1x8x128xf32>
    %c0_17 = arith.constant 0 : index
    %c0_18 = arith.constant 0 : index
    %c0_19 = arith.constant 0 : index
    %23 = vector.load %arg6[%c0_17, %c0_18, %c0_19] : memref<1x8x128xf32, #tpu.memory_space<vmem>>, vector<1x8x128xf32>
    tpu.vector_store %arg6[%c0_17, %c0_18, %c0_19], %22 {strides = array<i32>} : memref<1x8x128xf32, #tpu.memory_space<vmem>>, vector<1x8x128xf32>,
    return
  }
  func.func @transform_0(%arg0: i32, %arg1: i32) -> (i32, i32) {
    %c1_i32 = arith.constant 1 : i32
    %0 = arith.muli %arg0, %c1_i32 : i32
    %1 = arith.addi %0, %arg1 : i32
    %c0_i32 = arith.constant 0 : i32
    %c0_i32_0 = arith.constant 0 : i32
    return %1, %c0_i32 : i32, i32
  }
  func.func @transform_1(%arg0: i32, %arg1: i32) -> (i32, i32) {
    %c1_i32 = arith.constant 1 : i32
    %0 = arith.muli %arg0, %c1_i32 : i32
    %1 = arith.addi %0, %arg1 : i32
    %c0_i32 = arith.constant 0 : i32
    %c0_i32_0 = arith.constant 0 : i32
    return %1, %c0_i32 : i32, i32
  }
  func.func @transform_2(%arg0: i32, %arg1: i32) -> (i32, i32) {
    %c1_i32 = arith.constant 1 : i32
    %0 = arith.muli %arg0, %c1_i32 : i32
    %1 = arith.addi %0, %arg1 : i32
    %c0_i32 = arith.constant 0 : i32
    %c0_i32_0 = arith.constant 0 : i32
    return %1, %c0_i32 : i32, i32
  }
  func.func @transform_3(%arg0: i32, %arg1: i32) -> (i32, i32, i32) {
    %c0_i32 = arith.constant 0 : i32
    %c0_i32_0 = arith.constant 0 : i32
    %c0_i32_1 = arith.constant 0 : i32
    return %arg0, %c0_i32, %c0_i32_0 : i32, i32, i32
  }
  func.func @transform_4(%arg0: i32, %arg1: i32) -> (i32, i32, i32) {
    %c0_i32 = arith.constant 0 : i32
    %c0_i32_0 = arith.constant 0 : i32
    %c0_i32_1 = arith.constant 0 : i32
    return %arg0, %c0_i32, %c0_i32_0 : i32, i32, i32
  }
}

</mosaic_0001>

<llo_original>
// kernel: tpu_custom_call.1
$region0: #{tpu_custom_call.1}
  #allocation0 [shape = 'u32[]', space=smem, size = 0x4, offset = 0x4, fixed_abs, tag = 'smem constant byte address 0x4 - core index']
  #allocation1 [shape = 'u32[144,128]{1,0:T(1,128)}', space=vmem, size = 0x12000, scoped, tag = 'internal scratch']
  %s0 = inlined_call_operand.hbm [shape: f32[48,128], index: 0, kind: input, shape index: {}]
  %s1 = inlined_call_operand.hbm [shape: f32[48,128], index: 1, kind: input, shape index: {}]
  %s2 = inlined_call_operand.hbm [shape: f32[48,128], index: 2, kind: input, shape index: {}]
  %s3 = inlined_call_operand.hbm [shape: f32[1,8,128], index: 3, kind: output, shape index: {0}]
  %s4 = inlined_call_operand.hbm [shape: f32[1,8,128], index: 4, kind: output, shape index: {1}]
  %5 = xla_tuple %s3, %s4
  %s6 = sld [smem:[#allocation0]]
  $region46: #{tpu_custom_call.1} parent=0
    _
  %s8 = ssub.s32 1, %s6
  %s9 = scalar_select 0, %s8, %s6
  $region1: #{tpu_custom_call.1} parent=0
    #allocation2 [shape = 'u8[24576]{0}', space=vmem, size = 0x6000, scoped, tag = 'input window, operand 0, single buffered']
    #allocation3 [shape = 's32[1]{0}', space=sflag, size = 0x4, scoped, tag = 'scoped memory for tpu_custom_call.1']
    #allocation4 [shape = 's32[1]{0}', space=sflag, size = 0x4, scoped, tag = 'scoped memory for tpu_custom_call.1']
    #allocation5 [shape = 'u8[24576]{0}', space=vmem, size = 0x6000, scoped, tag = 'input window, operand 1, single buffered']
    #allocation6 [shape = 's32[1]{0}', space=sflag, size = 0x4, scoped, tag = 'scoped memory for tpu_custom_call.1']
    #allocation7 [shape = 'u8[24576]{0}', space=vmem, size = 0x6000, scoped, tag = 'input window, operand 2, single buffered']
    #allocation8 [shape = 'u8[4096]{0}', space=vmem, size = 0x1000, scoped, tag = 'output window, operand 0, single buffered']
    #allocation9 [shape = 'u8[4096]{0}', space=vmem, size = 0x1000, scoped, tag = 'output window, operand 1, single buffered']
    #allocation10 [shape = 's32[1]{0}', space=sflag, size = 0x4, scoped, tag = 'scoped memory for tpu_custom_call.1']
    %10 = vsyncpa [#allocation3], 0
    %11 = vsyncpa [#allocation6], 0
    %12 = vsyncpa [#allocation4], 0
    %13 = vsyncpa [#allocation10], 0
    // Predicated region
    $region2: #{tpu_custom_call.1} parent=1 // pred_check
      _
    $region3: #{tpu_custom_call.1} parent=1 // pred_check_branch
      %15 = sbr.rel (0) target = $region5
    $region4: #{tpu_custom_call.1} parent=1 // pred_region
      %s16 = sadd.s32 0, 0
      %s17 = smul.u32 6, %s16
      %s19 = ssub.s32 768, 768
      %20 = vsyncadd [#allocation3], %s19
      %s21 = smul.addr %s17, 128
      %s22 = scalar_lea.hbm %s0, %s21
      %s23 = sshll.u32 [#allocation2], 4
      %s24 = int_to_ptr.vmem [resolvable:$true] %s23
      %29 = dma.hbm_to_vmem [thread:$0]  %s22, 768, %s24, [#allocation3], 128, 128, 8
    $region5: #{tpu_custom_call.1} parent=1 // pred_fallthru
      _
    // Predicated region
    $region6: #{tpu_custom_call.1} parent=1 // pred_check
      _
    $region7: #{tpu_custom_call.1} parent=1 // pred_check_branch
      %31 = sbr.rel (0) target = $region9
    $region8: #{tpu_custom_call.1} parent=1 // pred_region
      %s32 = sadd.s32 0, 0
      %s33 = smul.u32 6, %s32
      %s35 = ssub.s32 768, 768
      %36 = vsyncadd [#allocation6], %s35
      %s37 = smul.addr %s33, 128
      %s38 = scalar_lea.hbm %s1, %s37
      %s39 = sshll.u32 [#allocation5], 4
      %s40 = int_to_ptr.vmem [resolvable:$true] %s39
      %45 = dma.hbm_to_vmem [thread:$0]  %s38, 768, %s40, [#allocation6], 128, 128, 8
    $region9: #{tpu_custom_call.1} parent=1 // pred_fallthru
      _
    // Predicated region
    $region10: #{tpu_custom_call.1} parent=1 // pred_check
      _
    $region11: #{tpu_custom_call.1} parent=1 // pred_check_branch
      %47 = sbr.rel (0) target = $region13
    $region12: #{tpu_custom_call.1} parent=1 // pred_region
      %s48 = sadd.s32 0, 0
      %s49 = smul.u32 6, %s48
      %s51 = ssub.s32 768, 768
      %52 = vsyncadd [#allocation6], %s51
      %s53 = smul.addr %s49, 128
      %s54 = scalar_lea.hbm %s2, %s53
      %s55 = sshll.u32 [#allocation7], 4
      %s56 = int_to_ptr.vmem [resolvable:$true] %s55
      %61 = dma.hbm_to_vmem [thread:$0]  %s54, 768, %s56, [#allocation6], 128, 128, 8
    $region13: #{tpu_custom_call.1} parent=1 // pred_fallthru
      _
    // Predicated region
    $region14: #{tpu_custom_call.1} parent=1 // pred_check
      _
    $region15: #{tpu_custom_call.1} parent=1 // pred_check_branch
      %63 = sbr.rel (0) target = $region17
    $region16: #{tpu_custom_call.1} parent=1 // pred_region
      %64 = dma.done [#allocation3], 768
    $region17: #{tpu_custom_call.1} parent=1 // pred_fallthru
      _
    // Predicated region
    $region18: #{tpu_custom_call.1} parent=1 // pred_check
      _
    $region19: #{tpu_custom_call.1} parent=1 // pred_check_branch
      %66 = sbr.rel (0) target = $region21
    $region20: #{tpu_custom_call.1} parent=1 // pred_region
      %67 = dma.done [#allocation6], 768
    $region21: #{tpu_custom_call.1} parent=1 // pred_fallthru
      _
    // Predicated region
    $region22: #{tpu_custom_call.1} parent=1 // pred_check
      _
    $region23: #{tpu_custom_call.1} parent=1 // pred_check_branch
      %69 = sbr.rel (0) target = $region25
    $region24: #{tpu_custom_call.1} parent=1 // pred_region
      %70 = dma.done [#allocation6], 768
    $region25: #{tpu_custom_call.1} parent=1 // pred_fallthru
      _
    %s71 = sadd.s32 0, 0
    %s72 = smul.u32 6, %s71
    %s73 = sadd.s32 0, 0
    %s74 = smul.u32 6, %s73
    %s75 = sadd.s32 0, 0
    %s76 = smul.u32 6, %s75
    %p77 = scmp.eq.s32.totalorder 0, 0
    // Predicated region
    $region26: #{tpu_custom_call.1} parent=1 // pred_check
      %p78 = pneg %p77
    $region27: #{tpu_custom_call.1} parent=1 // pred_check_branch
      %80 = sbr.rel (%p78) target = $region29
    $region28: #{tpu_custom_call.1} parent=1 // pred_region
      %81 = vst [vmem:[#allocation8] sm:$0xff] 0.0
      %82 = vst [vmem:[#allocation9] sm:$0xff] 0.0
    $region29: #{tpu_custom_call.1} parent=1 // pred_fallthru
      _
    %v83 = vld [vmem:[#allocation2] sm:$0xff]
    %v84 = vld [vmem:[#allocation2 + $0x8] sm:$0xff]
    %v85 = vld [vmem:[#allocation2 + $0x10] sm:$0xff]
    %v86 = vld [vmem:[#allocation2 + $0x18] sm:$0xff]
    %v87 = vld [vmem:[#allocation2 + $0x20] sm:$0xff]
    %v88 = vld [vmem:[#allocation2 + $0x28] sm:$0xff]
    %v89 = vld [vmem:[#allocation5] sm:$0xff]
    %v90 = vld [vmem:[#allocation5 + $0x8] sm:$0xff]
    %v91 = vld [vmem:[#allocation5 + $0x10] sm:$0xff]
    %v92 = vld [vmem:[#allocation5 + $0x18] sm:$0xff]
    %v93 = vld [vmem:[#allocation5 + $0x20] sm:$0xff]
    %v94 = vld [vmem:[#allocation5 + $0x28] sm:$0xff]
    %v95 = vld [vmem:[#allocation7] sm:$0xff]
    %v96 = vld [vmem:[#allocation7 + $0x8] sm:$0xff]
    %v97 = vld [vmem:[#allocation7 + $0x10] sm:$0xff]
    %v98 = vld [vmem:[#allocation7 + $0x18] sm:$0xff]
    %v99 = vld [vmem:[#allocation7 + $0x20] sm:$0xff]
    %v100 = vld [vmem:[#allocation7 + $0x28] sm:$0xff]
    %v101 = vsub.f32 1.0, %v95
    %v102 = vsub.f32 1.0, %v96
    %v103 = vsub.f32 1.0, %v97
    %v104 = vsub.f32 1.0, %v98
    %v105 = vsub.f32 1.0, %v99
    %v106 = vsub.f32 1.0, %v100
    %v107 = vmul.f32 %v83, %v101
    %v108 = vmul.f32 %v84, %v102
    %v109 = vmul.f32 %v85, %v103
    %v110 = vmul.f32 %v86, %v104
    %v111 = vmul.f32 %v87, %v105
    %v112 = vmul.f32 %v88, %v106
    %v113 = vmul.f32 %v89, %v101
    %v114 = vmul.f32 %v90, %v102
    %v115 = vmul.f32 %v91, %v103
    %v116 = vmul.f32 %v92, %v104
    %v117 = vmul.f32 %v93, %v105
    %v118 = vmul.f32 %v94, %v106
    %v119 = vsub.f32 %v107, %v113
    %v120 = vsub.f32 %v108, %v114
    %v121 = vsub.f32 %v109, %v115
    %v122 = vsub.f32 %v110, %v116
    %v123 = vsub.f32 %v111, %v117
    %v124 = vsub.f32 %v112, %v118
    %v125 = vand.u32 2147483647, %v119
    %v126 = vand.u32 2147483647, %v120
    %v127 = vand.u32 2147483647, %v121
    %v128 = vand.u32 2147483647, %v122
    %v129 = vand.u32 2147483647, %v123
    %v130 = vand.u32 2147483647, %v124
    %v131 = vld [vmem:[#allocation8] sm:$0xff]
    %v132 = vadd.f32 %v125, %v126
    %v133 = vadd.f32 %v132, %v127
    %v134 = vadd.f32 %v133, %v128
    %v135 = vadd.f32 %v134, %v129
    %v136 = vadd.f32 %v135, %v130
    %v137 = vadd.f32 %v131, %v136
    %138 = vst [vmem:[#allocation8] sm:$0xff] %v137
    %v139 = vld [vmem:[#allocation9] sm:$0xff]
    %v140 = vadd.f32 %v101, %v102
    %v141 = vadd.f32 %v140, %v103
    %v142 = vadd.f32 %v141, %v104
    %v143 = vadd.f32 %v142, %v105
    %v144 = vadd.f32 %v143, %v106
    %v145 = vadd.f32 %v139, %v144
    %146 = vst [vmem:[#allocation9] sm:$0xff] %v145
    // Predicated region
    $region30: #{tpu_custom_call.1} parent=1 // pred_check
      _
    $region31: #{tpu_custom_call.1} parent=1 // pred_check_branch
      %148 = sbr.rel (0) target = $region33
    $region32: #{tpu_custom_call.1} parent=1 // pred_region
      %s150 = ssub.s32 128, 128
      %151 = vsyncadd [#allocation4], %s150
      %s153 = sshll.u32 [#allocation8], 4
      %s154 = int_to_ptr.vmem [resolvable:$true] %s153
      %156 = dma.vmem_to_hbm [thread:$0]  %s154, 128, %s3, [#allocation4]
    $region33: #{tpu_custom_call.1} parent=1 // pred_fallthru
      _
    // Predicated region
    $region34: #{tpu_custom_call.1} parent=1 // pred_check
      _
    $region35: #{tpu_custom_call.1} parent=1 // pred_check_branch
      %158 = sbr.rel (0) target = $region37
    $region36: #{tpu_custom_call.1} parent=1 // pred_region
      %s160 = ssub.s32 128, 128
      %161 = vsyncadd [#allocation10], %s160
      %s163 = sshll.u32 [#allocation9], 4
      %s164 = int_to_ptr.vmem [resolvable:$true] %s163
      %166 = dma.vmem_to_hbm [thread:$0]  %s164, 128, %s4, [#allocation10]
    $region37: #{tpu_custom_call.1} parent=1 // pred_fallthru
      _
    // Predicated region
    $region38: #{tpu_custom_call.1} parent=1 // pred_check
      _
    $region39: #{tpu_custom_call.1} parent=1 // pred_check_branch
      %168 = sbr.rel (0) target = $region41
    $region40: #{tpu_custom_call.1} parent=1 // pred_region
      %169 = dma.done [#allocation4], 128
    $region41: #{tpu_custom_call.1} parent=1 // pred_fallthru
      _
    // Predicated region
    $region42: #{tpu_custom_call.1} parent=1 // pred_check
      _
    $region43: #{tpu_custom_call.1} parent=1 // pred_check_branch
      %171 = sbr.rel (0) target = $region45
    $region44: #{tpu_custom_call.1} parent=1 // pred_region
      %172 = dma.done [#allocation10], 128
    $region45: #{tpu_custom_call.1} parent=1 // pred_fallthru
      _
    %173 = vsyncpa [#allocation3], 1
    %174 = vsyncpa [#allocation6], 1
    %175 = vsyncpa [#allocation4], 1
    %176 = vsyncpa [#allocation10], 1

</llo_original>
